<compile_context>
chip_gen: v6e
topology: v6e:2x2x1
jax: 0.10.0
libtpu: 0.0.40
codegen_flags: <defaults>
</compile_context>

<pallas_src>
import functools
import math

import jax
import jax.numpy as jnp
from jax.experimental import pallas as pl
from jax.experimental.pallas import tpu as pltpu

LANES = 128
SUBLANES = 8
UNIT = SUBLANES * LANES          # 1024 elements = one (8,128) f32 slab
_LOG_CLAMP = -100.0              # PyTorch binary_cross_entropy clamps log terms at -100
_VMEM_LIMIT = 40 * 1024 * 1024   # explicit scoped-VMEM budget (under v7x 64 MiB physical)


def _pow_mod(omp, gamma):
    """(1 - pt)**gamma, specialised for small integer gamma (no transcendentals)."""
    g = float(gamma)
    if g == 0.0:
        return jnp.ones_like(omp)
    if g == 1.0:
        return omp
    if g == 2.0:                       # default: single multiply
        return omp * omp
    if g.is_integer() and 0.0 < g <= 8.0:
        mod = omp
        for _ in range(int(g) - 1):
            mod = mod * omp
        return mod
    # Non-integer gamma: guard pow at omp == 0 (exp(g*log(0)) would be NaN*0).
    return jnp.where(omp > 0.0, omp ** g, 0.0)


def _focal_elem(p, t, *, alpha, gamma, binary_targets):
    """Elementwise focal loss in f32 (matches torch's BCE(logits=False) path)."""
    p = p.astype(jnp.float32)
    t = t.astype(jnp.float32)
    if binary_targets:
        # Fast path, exact for hard labels t in {0,1}:
        #   q   = P(correct class) = t*p + (1-t)*(1-p)
        #   BCE = -max(log q, -100)          (1 log instead of 2 logs + 1 exp)
        #   pt  = q   (differs from exp(-BCE) only below exp(-100) ~ 4e-44)
        q = t * p + (1.0 - t) * (1.0 - p)
        bce = jnp.minimum(-jnp.log(q), -_LOG_CLAMP)
        omp = jnp.maximum(1.0 - q, 0.0)
    else:
        log_p = jnp.maximum(jnp.log(p), _LOG_CLAMP)
        log_1mp = jnp.maximum(jnp.log(1.0 - p), _LOG_CLAMP)
        bce = -(t * log_p + (1.0 - t) * log_1mp)
        pt = jnp.exp(-bce)
        omp = jnp.maximum(1.0 - pt, 0.0)
    return alpha * _pow_mod(omp, gamma) * bce


def _focal_sum_kernel(x_ref, t_ref, acc_ref, *, alpha, gamma, binary_targets, acc_rows):
    """Reduce-only variant: accumulate directly into the resident output block."""
    j = pl.program_id(1)

    @pl.when(j == 0)
    def _init():
        acc_ref[...] = jnp.zeros_like(acc_ref)

    f = _focal_elem(x_ref[...], t_ref[...], alpha=alpha, gamma=gamma,
                    binary_targets=binary_targets)
    # (tr,128) -> (tr/acc_rows, acc_rows, 128) and sum the leading axis: pure VALU
    # adds into acc_rows/8 independent vregs (ILP), no cross-lane work in-kernel.
    acc_ref[...] += f.reshape(-1, acc_rows, LANES).sum(axis=0)


def _focal_map_kernel(x_ref, t_ref, o_ref, *, alpha, gamma, binary_targets):
    """Elementwise (reduce=False) variant: no accumulator, fully parallel grid."""
    f = _focal_elem(x_ref[...], t_ref[...], alpha=alpha, gamma=gamma,
                    binary_targets=binary_targets)
    o_ref[...] = f.astype(o_ref.dtype)


def _bulk_2d(flat, bulk_elems, n_elems, bulk_rows):
    if bulk_elems != n_elems:
        flat = jax.lax.slice(flat, (0,), (bulk_elems,))
    return flat.reshape(bulk_rows, LANES)


def focal_loss(inputs, targets, *, alpha=1.0, gamma=2.0, reduce=True,
               binary_targets=False, tile_rows=8192):
    """Pallas TPU implementation of FocalLoss.forward (logits=False).

    binary_targets=True enables a faster exact-for-hard-labels path (t in {0,1});
    leave False for soft targets (matches torch semantics exactly).
    """
    orig_shape = inputs.shape
    n_elems = int(inputs.size)
    alpha = float(alpha)
    gamma = float(gamma)
    out_dtype = inputs.dtype

    flat_x = inputs.reshape(-1)
    flat_t = targets.reshape(-1)

    # Block sizing: (tr, 128) blocks where tr is a multiple of 8 ("unit" = 8 rows
    # = 1024 elems).  Whole blocks go through the kernel ("bulk"); the remaining
    # sub-block tail is computed with plain JAX (tiny, no padding / extra passes).
    tile_rows = max(SUBLANES, (int(tile_rows) // SUBLANES) * SUBLANES)
    upb_max = tile_rows // SUBLANES
    n_units = n_elems // UNIT

    if n_units == 0:
        # Smaller than one (8,128) slab: plain JAX is the right tool.
        f = _focal_elem(flat_x, flat_t, alpha=alpha, gamma=gamma,
                        binary_targets=binary_targets)
        if reduce:
            return jnp.sum(f) / jnp.float32(n_elems)
        return f.astype(out_dtype).reshape(orig_shape)

    if reduce:
        n_blocks = pl.cdiv(n_units, upb_max)
        if n_units >= 2 and n_blocks % 2:
            n_blocks += 1                      # guarantee a 2-way split (v7x 2 TCs)
        upb = n_units // n_blocks              # units per block (>= 1)
        tr = upb * SUBLANES                    # rows per block, multiple of 8
        n_outer = 2 if n_blocks >= 2 else 1
        n_inner = n_blocks // n_outer
        bulk_rows = n_blocks * tr
        bulk_elems = bulk_rows * LANES
        acc_rows = math.gcd(tr, 64)            # 8..64 rows -> 1..8 f32 accumulator vregs

        x2d = _bulk_2d(flat_x, bulk_elems, n_elems, bulk_rows)
        t2d = _bulk_2d(flat_t, bulk_elems, n_elems, bulk_rows)

        kernel = functools.partial(
            _focal_sum_kernel, alpha=alpha, gamma=gamma,
            binary_targets=binary_targets, acc_rows=acc_rows)
        partials = pl.pallas_call(
            kernel,
            out_shape=jax.ShapeDtypeStruct((n_outer * acc_rows, LANES), jnp.float32),
            grid_spec=pltpu.PrefetchScalarGridSpec(
                num_scalar_prefetch=0,
                grid=(n_outer, n_inner),
                in_specs=[
                    pl.BlockSpec((tr, LANES), lambda i, j: (i * n_inner + j, 0)),
                    pl.BlockSpec((tr, LANES), lambda i, j: (i * n_inner + j, 0)),
                ],
                out_specs=pl.BlockSpec((acc_rows, LANES), lambda i, j: (i, 0)),
            ),
            compiler_params=pltpu.CompilerParams(
                dimension_semantics=("parallel", "arbitrary"),
                vmem_limit_bytes=_VMEM_LIMIT,
            ),
        )(x2d, t2d)

        total = jnp.sum(partials)
        if bulk_elems != n_elems:
            tail = _focal_elem(flat_x[bulk_elems:], flat_t[bulk_elems:],
                               alpha=alpha, gamma=gamma,
                               binary_targets=binary_targets)
            total = total + jnp.sum(tail)
        return total / jnp.float32(n_elems)

    # reduce=False: pure elementwise map, fully parallel grid, no sum output.
    n_blocks = pl.cdiv(n_units, upb_max)
    upb = n_units // n_blocks
    tr = upb * SUBLANES
    bulk_rows = n_blocks * tr
    bulk_elems = bulk_rows * LANES

    x2d = _bulk_2d(flat_x, bulk_elems, n_elems, bulk_rows)
    t2d = _bulk_2d(flat_t, bulk_elems, n_elems, bulk_rows)

    kernel = functools.partial(
        _focal_map_kernel, alpha=alpha, gamma=gamma, binary_targets=binary_targets)
    bulk_out = pl.pallas_call(
        kernel,
        out_shape=jax.ShapeDtypeStruct((bulk_rows, LANES), out_dtype),
        grid_spec=pltpu.PrefetchScalarGridSpec(
            num_scalar_prefetch=0,
            grid=(n_blocks,),
            in_specs=[
                pl.BlockSpec((tr, LANES), lambda i: (i, 0)),
                pl.BlockSpec((tr, LANES), lambda i: (i, 0)),
            ],
            out_specs=pl.BlockSpec((tr, LANES), lambda i: (i, 0)),
        ),
        compiler_params=pltpu.CompilerParams(
            dimension_semantics=("parallel",),
            vmem_limit_bytes=_VMEM_LIMIT,
        ),
    )(x2d, t2d)

    out_flat = bulk_out.reshape(-1)
    if bulk_elems != n_elems:
        tail = _focal_elem(flat_x[bulk_elems:], flat_t[bulk_elems:],
                           alpha=alpha, gamma=gamma, binary_targets=binary_targets)
        out_flat = jnp.concatenate([out_flat, tail.astype(out_dtype)])
    return out_flat.reshape(orig_shape)


def _focal_loss_ref(inputs, targets, alpha=1.0, gamma=2.0, reduce=True):
    """Pure-JAX reference matching torch semantics (logits=False)."""
    p = inputs.astype(jnp.float32)
    t = targets.astype(jnp.float32)
    log_p = jnp.maximum(jnp.log(p), _LOG_CLAMP)
    log_1mp = jnp.maximum(jnp.log(1.0 - p), _LOG_CLAMP)
    bce = -(t * log_p + (1.0 - t) * log_1mp)
    pt = jnp.exp(-bce)
    fl = alpha * (1.0 - pt) ** gamma * bce
    return jnp.mean(fl) if reduce else fl


if __name__ == "__main__":
    key = jax.random.PRNGKey(0)
    k1, k2, k3, k4 = jax.random.split(key, 4)

    # inputs are probabilities (logits=False path), targets in {0, 1}
    shape = (2, 4, 16, 16)
    inputs = jax.nn.sigmoid(jax.random.normal(k1, shape, dtype=jnp.float32))
    targets = (jax.random.uniform(k2, shape) > 0.5).astype(jnp.float32)

    # reduce=True (module default): scalar mean focal loss
    out = jax.block_until_ready(focal_loss(inputs, targets, alpha=1.0, gamma=2.0))
    ref = _focal_loss_ref(inputs, targets, reduce=True)
    assert jnp.allclose(out, ref, rtol=1e-5, atol=1e-6), (out, ref)

    # binary-target fast path (hard labels): must match the reference
    out_b = jax.block_until_ready(focal_loss(inputs, targets, binary_targets=True))
    assert jnp.allclose(out_b, ref, rtol=1e-5, atol=1e-6), (out_b, ref)

    # reduce=False path: elementwise focal loss, same shape as input
    out_e = jax.block_until_ready(focal_loss(inputs, targets, reduce=False))
    ref_e = _focal_loss_ref(inputs, targets, reduce=False)
    assert out_e.shape == shape
    assert jnp.allclose(out_e, ref_e, rtol=1e-5, atol=1e-6)

    # Ragged shape: exercises bulk-kernel + sub-block JAX tail, integer gamma != 2
    shape2 = (3, 67, 129)
    inputs2 = jax.nn.sigmoid(jax.random.normal(k3, shape2, dtype=jnp.float32))
    targets2 = (jax.random.uniform(k4, shape2) > 0.5).astype(jnp.float32)
    out2 = jax.block_until_ready(
        focal_loss(inputs2, targets2, alpha=0.5, gamma=3.0, reduce=True))
    ref2 = _focal_loss_ref(inputs2, targets2, alpha=0.5, gamma=3.0, reduce=True)
    assert jnp.allclose(out2, ref2, rtol=1e-5, atol=1e-6), (out2, ref2)

    # Tiny ragged shape (smaller than one (8,128) slab -> pure-JAX fallback)
    shape3 = (3, 5, 7)
    inputs3 = jax.nn.sigmoid(jax.random.normal(k1, shape3, dtype=jnp.float32))
    targets3 = (jax.random.uniform(k2, shape3) > 0.5).astype(jnp.float32)
    out3 = jax.block_until_ready(focal_loss(inputs3, targets3, reduce=True))
    ref3 = _focal_loss_ref(inputs3, targets3, reduce=True)
    assert jnp.allclose(out3, ref3, rtol=1e-5, atol=1e-6), (out3, ref3)

    print("KERNEL_OK")
</pallas_src>

<mosaic_0001>
module attributes {stable_mosaic.version = 11 : i64} {
  func.func @_focal_sum_kernel(%arg0: i32, %arg1: i32, %arg2: memref<8x128xf32, #tpu.memory_space<vmem>>, %arg3: memref<8x128xf32, #tpu.memory_space<vmem>>, %arg4: memref<8x128xf32, #tpu.memory_space<vmem>>) attributes {dimension_semantics = [#tpu.dimension_semantics<parallel>, #tpu.dimension_semantics<arbitrary>], iteration_bounds = array<i64: 2, 1>, scalar_prefetch = 0 : i64, scratch_operands = 0 : i64, tpu.core_type = #tpu.core_type<tc>, window_params = [{transform_indices = @transform_0, window_bounds = array<i64: 8, 128>}, {transform_indices = @transform_1, window_bounds = array<i64: 8, 128>}, {transform_indices = @transform_2, window_bounds = array<i64: 8, 128>}]} {
    %c0_i32 = arith.constant 0 : i32
    %0 = arith.cmpi eq, %arg1, %c0_i32 : i32
    %1 = arith.extui %0 : i1 to i32
    %c0_i32_0 = arith.constant 0 : i32
    %2 = arith.cmpi ne, %1, %c0_i32_0 : i32
    scf.if %2 {
      %cst_17 = arith.constant 0.000000e+00 : f32
      %36 = vector.broadcast %cst_17 : f32 to vector<8x128xf32>
      %c0_18 = arith.constant 0 : index
      %c0_19 = arith.constant 0 : index
      %37 = vector.load %arg4[%c0_18, %c0_19] : memref<8x128xf32, #tpu.memory_space<vmem>>, vector<8x128xf32>
      tpu.vector_store %arg4[%c0_18, %c0_19], %36 {strides = array<i32>} : memref<8x128xf32, #tpu.memory_space<vmem>>, vector<8x128xf32>,
    } else {
    }
    %c0 = arith.constant 0 : index
    %c0_1 = arith.constant 0 : index
    %3 = vector.load %arg2[%c0, %c0_1] : memref<8x128xf32, #tpu.memory_space<vmem>>, vector<8x128xf32>
    %c0_2 = arith.constant 0 : index
    %c0_3 = arith.constant 0 : index
    %4 = vector.load %arg3[%c0_2, %c0_3] : memref<8x128xf32, #tpu.memory_space<vmem>>, vector<8x128xf32>
    %5 = math.log %3 : vector<8x128xf32>
    %cst = arith.constant -1.000000e+02 : f32
    %6 = vector.broadcast %cst : f32 to vector<8x128xf32>
    %7 = arith.maximumf %5, %6 : vector<8x128xf32>
    %cst_4 = arith.constant 1.000000e+00 : f32
    %8 = vector.broadcast %cst_4 : f32 to vector<8x128xf32>
    %9 = arith.subf %8, %3 : vector<8x128xf32>
    %10 = math.log %9 : vector<8x128xf32>
    %cst_5 = arith.constant -1.000000e+02 : f32
    %11 = vector.broadcast %cst_5 : f32 to vector<8x128xf32>
    %12 = arith.maximumf %10, %11 : vector<8x128xf32>
    %13 = arith.mulf %4, %7 : vector<8x128xf32>
    %cst_6 = arith.constant 1.000000e+00 : f32
    %14 = vector.broadcast %cst_6 : f32 to vector<8x128xf32>
    %15 = arith.subf %14, %4 : vector<8x128xf32>
    %16 = arith.mulf %15, %12 : vector<8x128xf32>
    %17 = arith.addf %13, %16 : vector<8x128xf32>
    %cst_7 = arith.constant 0.000000e+00 : f32
    %18 = vector.broadcast %cst_7 : f32 to vector<8x128xf32>
    %19 = arith.subf %18, %17 : vector<8x128xf32>
    %cst_8 = arith.constant 0.000000e+00 : f32
    %20 = vector.broadcast %cst_8 : f32 to vector<8x128xf32>
    %21 = arith.subf %20, %19 : vector<8x128xf32>
    %22 = math.exp %21 : vector<8x128xf32>
    %cst_9 = arith.constant 1.000000e+00 : f32
    %23 = vector.broadcast %cst_9 : f32 to vector<8x128xf32>
    %24 = arith.subf %23, %22 : vector<8x128xf32>
    %cst_10 = arith.constant 0.000000e+00 : f32
    %25 = vector.broadcast %cst_10 : f32 to vector<8x128xf32>
    %26 = arith.maximumf %24, %25 : vector<8x128xf32>
    %27 = arith.mulf %26, %26 : vector<8x128xf32>
    %cst_11 = arith.constant 1.000000e+00 : f32
    %28 = vector.broadcast %cst_11 : f32 to vector<8x128xf32>
    %29 = arith.mulf %28, %27 : vector<8x128xf32>
    %30 = arith.mulf %29, %19 : vector<8x128xf32>
    %c0_12 = arith.constant 0 : index
    %c0_13 = arith.constant 0 : index
    %31 = vector.load %arg4[%c0_12, %c0_13] : memref<8x128xf32, #tpu.memory_space<vmem>>, vector<8x128xf32>
    %32 = vector.shape_cast %30 : vector<8x128xf32> to vector<1x8x128xf32>
    %cst_14 = arith.constant dense<0.000000e+00> : vector<8x128xf32>
    %33 = vector.multi_reduction <add>, %32, %cst_14 [0] : vector<1x8x128xf32> to vector<8x128xf32>
    %34 = arith.addf %31, %33 : vector<8x128xf32>
    %c0_15 = arith.constant 0 : index
    %c0_16 = arith.constant 0 : index
    %35 = vector.load %arg4[%c0_15, %c0_16] : memref<8x128xf32, #tpu.memory_space<vmem>>, vector<8x128xf32>
    tpu.vector_store %arg4[%c0_15, %c0_16], %34 {strides = array<i32>} : memref<8x128xf32, #tpu.memory_space<vmem>>, vector<8x128xf32>,
    return
  }
  func.func @transform_0(%arg0: i32, %arg1: i32) -> (i32, i32) {
    %c1_i32 = arith.constant 1 : i32
    %0 = arith.muli %arg0, %c1_i32 : i32
    %1 = arith.addi %0, %arg1 : i32
    %c0_i32 = arith.constant 0 : i32
    %c0_i32_0 = arith.constant 0 : i32
    return %1, %c0_i32 : i32, i32
  }
  func.func @transform_1(%arg0: i32, %arg1: i32) -> (i32, i32) {
    %c1_i32 = arith.constant 1 : i32
    %0 = arith.muli %arg0, %c1_i32 : i32
    %1 = arith.addi %0, %arg1 : i32
    %c0_i32 = arith.constant 0 : i32
    %c0_i32_0 = arith.constant 0 : i32
    return %1, %c0_i32 : i32, i32
  }
  func.func @transform_2(%arg0: i32, %arg1: i32) -> (i32, i32) {
    %c0_i32 = arith.constant 0 : i32
    %c0_i32_0 = arith.constant 0 : i32
    return %arg0, %c0_i32 : i32, i32
  }
}

</mosaic_0001>

<llo_original>
// kernel: tpu_custom_call.1
$region0: #{tpu_custom_call.1}
  #allocation0 [shape = 'u32[]', space=smem, size = 0x4, offset = 0x4, fixed_abs, tag = 'smem constant byte address 0x4 - core index']
  #allocation1 [shape = 'u32[144,128]{1,0:T(1,128)}', space=vmem, size = 0x12000, scoped, tag = 'internal scratch']
  %s0 = inlined_call_operand.hbm [shape: f32[16,128], index: 0, kind: input, shape index: {}]
  %s1 = inlined_call_operand.hbm [shape: f32[16,128], index: 1, kind: input, shape index: {}]
  %s2 = inlined_call_operand.hbm [shape: f32[16,128], index: 2, kind: output, shape index: {}]
  %s3 = sld [smem:[#allocation0]]
  $region53: #{tpu_custom_call.1} parent=0
    _
  %s5 = ssub.s32 1, %s3
  %s6 = scalar_select 0, %s5, %s3
  $region1: #{tpu_custom_call.1} parent=0
    #allocation2 [shape = 'u8[8192]{0}', space=vmem, size = 0x2000, scoped, tag = 'input window, operand 0']
    #allocation3 [shape = 's32[2]{0}', space=sflag, size = 0x8, scoped, tag = 'scoped memory for tpu_custom_call.1']
    #allocation4 [shape = 's32[2]{0}', space=sflag, size = 0x8, scoped, tag = 'scoped memory for tpu_custom_call.1']
    #allocation5 [shape = 'u8[8192]{0}', space=vmem, size = 0x2000, scoped, tag = 'input window, operand 1']
    #allocation6 [shape = 's32[2]{0}', space=sflag, size = 0x8, scoped, tag = 'scoped memory for tpu_custom_call.1']
    #allocation7 [shape = 'u8[8192]{0}', space=vmem, size = 0x2000, scoped, tag = 'output window, operand 0']
    %7 = vsyncpa [#allocation3], 0
    %s8 = scalar_lea.sflag [#allocation3], 1
    %9 = vsyncpa %s8, 0
    %10 = vsyncpa [#allocation6], 0
    %s11 = scalar_lea.sflag [#allocation6], 1
    %12 = vsyncpa %s11, 0
    %13 = vsyncpa [#allocation4], 0
    %s14 = scalar_lea.sflag [#allocation4], 1
    %15 = vsyncpa %s14, 0
    loop: start=0, step=1, limit=4
    $region2: #{tpu_custom_call.1} parent=1 // loop_pre_header
      _
    $region3: #{tpu_custom_call.1} parent=1 // loop_header
      %s17 = sphi 0, %s21
      %p18 = scmp.ge.s32.totalorder %s17, 4
      %s24 = sphi 0, %s36
      %s25 = sphi 0, %s32
      %s26 = sphi 0, %s24
      %s27 = sphi 0, %s25
      %s28 = sphi 0, %s26
      %s29 = sphi 0, %s27
      %s41 = sphi 0, %s43
      %s44 = sphi 0, %s41
      %s45 = sphi 0, %s44
      %s61 = sphi 0, %s45
      %s69 = sphi 0, %s71
      %s72 = sphi 0, %s69
      %s73 = sphi 0, %s72
      %s89 = sphi 0, %s73
      %s95 = sphi 0, %s97
      %s98 = sphi 0, %s95
      %s99 = sphi 0, %s98
      %s115 = sphi 0, %s99
    $region4: #{tpu_custom_call.1} parent=1 // loop_header_branch
      %20 = sbr.rel (%p18) target = $region8
    $region5: #{tpu_custom_call.1} parent=1 // loop_body
      %s22 = ssub.s32 %s17, 1
      %s23 = ssub.s32 %s17, 2
      %s30 = sadd.s32 1, %s25
      %p31 = scmp.ge.s32.totalorder %s30, 1
      %s32 = scalar_select %p31, 0, %s30
      %s33 = sadd.s32 1, %s24
      %s34 = scalar_select %p31, %s33, %s24
      %p35 = scmp.ge.s32.totalorder %s34, 2
      %s36 = scalar_select %p35, 0, %s34
      %s37 = sadd.s32 %s24, %s25
      %s38 = sadd.s32 %s36, %s32
      %s39 = ssub.s32 %s37, %s38
      %p40 = scmp.eq.s32.totalorder %s39, 0
      %s42 = sadd.s32 %s41, 1
      %s43 = scalar_select %p40, %s41, %s42
      %p46 = pneg %p40
      %p47 = scmp.eq.s32.totalorder %s17, 1
      %p48 = por %p46, %p47
      %p49 = scmp.ne.s32.totalorder %s41, %s44
      %p50 = scmp.eq.s32.totalorder %s17, 0
      %p51 = por %p49, %p50
      %p52 = scmp.ne.s32.totalorder %s41, %s44
      %p53 = scmp.eq.s32.totalorder %s22, 1
      %p54 = por %p52, %p53
      %p55 = scmp.ne.s32.totalorder %s44, %s45
      %p56 = scmp.eq.s32.totalorder %s22, 0
      %p57 = por %p55, %p56
      %p58 = scmp.ne.s32.totalorder %s44, %s45
      %p59 = scmp.eq.s32.totalorder %s23, 1
      %p60 = por %p58, %p59
      %p62 = scmp.ne.s32.totalorder %s45, %s61
      %p63 = scmp.eq.s32.totalorder %s23, 0
      %p64 = por %p62, %p63
      %s65 = sadd.s32 %s24, %s25
      %s66 = sadd.s32 %s36, %s32
      %s67 = ssub.s32 %s65, %s66
      %p68 = scmp.eq.s32.totalorder %s67, 0
      %s70 = sadd.s32 %s69, 1
      %s71 = scalar_select %p68, %s69, %s70
      %p74 = pneg %p68
      %p75 = scmp.eq.s32.totalorder %s17, 1
      %p76 = por %p74, %p75
      %p77 = scmp.ne.s32.totalorder %s69, %s72
      %p78 = scmp.eq.s32.totalorder %s17, 0
      %p79 = por %p77, %p78
      %p80 = scmp.ne.s32.totalorder %s69, %s72
      %p81 = scmp.eq.s32.totalorder %s22, 1
      %p82 = por %p80, %p81
      %p83 = scmp.ne.s32.totalorder %s72, %s73
      %p84 = scmp.eq.s32.totalorder %s22, 0
      %p85 = por %p83, %p84
      %p86 = scmp.ne.s32.totalorder %s72, %s73
      %p87 = scmp.eq.s32.totalorder %s23, 1
      %p88 = por %p86, %p87
      %p90 = scmp.ne.s32.totalorder %s73, %s89
      %p91 = scmp.eq.s32.totalorder %s23, 0
      %p92 = por %p90, %p91
      %s93 = ssub.s32 %s24, %s36
      %p94 = scmp.eq.s32.totalorder %s93, 0
      %s96 = sadd.s32 %s95, 1
      %s97 = scalar_select %p94, %s95, %s96
      %p100 = pneg %p94
      %p101 = scmp.eq.s32.totalorder %s17, 1
      %p102 = por %p100, %p101
      %p103 = scmp.ne.s32.totalorder %s95, %s98
      %p104 = scmp.eq.s32.totalorder %s17, 0
      %p105 = por %p103, %p104
      %p106 = scmp.ne.s32.totalorder %s95, %s98
      %p107 = scmp.eq.s32.totalorder %s22, 1
      %p108 = por %p106, %p107
      %p109 = scmp.ne.s32.totalorder %s98, %s99
      %p110 = scmp.eq.s32.totalorder %s22, 0
      %p111 = por %p109, %p110
      %p112 = scmp.ne.s32.totalorder %s98, %s99
      %p113 = scmp.eq.s32.totalorder %s23, 1
      %p114 = por %p112, %p113
      %p116 = scmp.ne.s32.totalorder %s99, %s115
      %p117 = scmp.eq.s32.totalorder %s23, 0
      %p118 = por %p116, %p117
      %p119 = scmp.le.s32.totalorder 1, %s17
      %p120 = scmp.lt.s32.totalorder %s17, 3
      %p121 = pnand %p119, %p120
      %p122 = pneg %p121
      // Predicated region
      $region9: #{tpu_custom_call.1} parent=5 // pred_check
        _
      $region10: #{tpu_custom_call.1} parent=5 // pred_check_branch
        %124 = sbr.rel (%p121) target = $region12
      $region11: #{tpu_custom_call.1} parent=5 // pred_region
        %s125 = ssub.s32 %s17, 1
      $region12: #{tpu_custom_call.1} parent=5 // pred_fallthru
        _
      %p126 = scmp.lt.s32.totalorder %s17, 2
      // Predicated region
      $region13: #{tpu_custom_call.1} parent=5 // pred_check
        %p127 = pneg %p126
      $region14: #{tpu_custom_call.1} parent=5 // pred_check_branch
        %129 = sbr.rel (%p127) target = $region16
      $region15: #{tpu_custom_call.1} parent=5 // pred_region
        // Predicated region
        $region17: #{tpu_custom_call.1} parent=15 // pred_check
          %p130 = pneg %p51
        $region18: #{tpu_custom_call.1} parent=15 // pred_check_branch
          %132 = sbr.rel (%p130) target = $region20
        $region19: #{tpu_custom_call.1} parent=15 // pred_region
          %s133 = sand.u32 %s41, 1
          %s134 = scalar_lea.sflag [#allocation3], %s133
          %s135 = sand.u32 %s41, 1
          %s136 = smul.addr %s135, 8
          %s137 = scalar_lea.vmem [#allocation2], %s136
          %s138 = sadd.s32 %s24, %s25
          %s140 = ssub.s32 128, 128
          %141 = vsyncadd %s134, %s140
          %s142 = smul.addr %s138, 128
          %s143 = scalar_lea.hbm %s0, %s142
          %s145 = sshll.u32 %s137, 4
          %s146 = int_to_ptr.vmem [resolvable:$true] %s145
          %148 = dma.hbm_to_vmem [thread:$0]  %s143, 128, %s146, %s134
        $region20: #{tpu_custom_call.1} parent=15 // pred_fallthru
          _
        // Predicated region
        $region21: #{tpu_custom_call.1} parent=15 // pred_check
          %p149 = pneg %p79
        $region22: #{tpu_custom_call.1} parent=15 // pred_check_branch
          %151 = sbr.rel (%p149) target = $region24
        $region23: #{tpu_custom_call.1} parent=15 // pred_region
          %s152 = sand.u32 %s69, 1
          %s153 = scalar_lea.sflag [#allocation6], %s152
          %s154 = sand.u32 %s69, 1
          %s155 = smul.addr %s154, 8
          %s156 = scalar_lea.vmem [#allocation5], %s155
          %s157 = sadd.s32 %s24, %s25
          %s159 = ssub.s32 128, 128
          %160 = vsyncadd %s153, %s159
          %s161 = smul.addr %s157, 128
          %s162 = scalar_lea.hbm %s1, %s161
          %s164 = sshll.u32 %s156, 4
          %s165 = int_to_ptr.vmem [resolvable:$true] %s164
          %167 = dma.hbm_to_vmem [thread:$0]  %s162, 128, %s165, %s153
        $region24: #{tpu_custom_call.1} parent=15 // pred_fallthru
          _
      $region16: #{tpu_custom_call.1} parent=5 // pred_fallthru
        _
      %p168 = scmp.le.s32.totalorder 1, %s17
      %p169 = scmp.lt.s32.totalorder %s17, 3
      %p170 = pnand %p168, %p169
      %p171 = pneg %p170
      // Predicated region
      $region25: #{tpu_custom_call.1} parent=5 // pred_check
        _
      $region26: #{tpu_custom_call.1} parent=5 // pred_check_branch
        %173 = sbr.rel (%p170) target = $region28
      $region27: #{tpu_custom_call.1} parent=5 // pred_region
        %s174 = ssub.s32 %s17, 1
        %s175 = sand.u32 %s44, 1
        %s176 = scalar_lea.sflag [#allocation3], %s175
        %s177 = sand.u32 %s44, 1
        %s178 = smul.addr %s177, 8
        %s179 = scalar_lea.vmem [#allocation2], %s178
        // Predicated region
        $region29: #{tpu_custom_call.1} parent=27 // pred_check
          %p180 = pneg %p57
        $region30: #{tpu_custom_call.1} parent=27 // pred_check_branch
          %182 = sbr.rel (%p180) target = $region32
        $region31: #{tpu_custom_call.1} parent=27 // pred_region
          %183 = dma.done %s176, 128
        $region32: #{tpu_custom_call.1} parent=27 // pred_fallthru
          _
        %s184 = sand.u32 %s72, 1
        %s185 = scalar_lea.sflag [#allocation6], %s184
        %s186 = sand.u32 %s72, 1
        %s187 = smul.addr %s186, 8
        %s188 = scalar_lea.vmem [#allocation5], %s187
        // Predicated region
        $region33: #{tpu_custom_call.1} parent=27 // pred_check
          %p189 = pneg %p85
        $region34: #{tpu_custom_call.1} parent=27 // pred_check_branch
          %191 = sbr.rel (%p189) target = $region36
        $region35: #{tpu_custom_call.1} parent=27 // pred_region
          %192 = dma.done %s185, 128
        $region36: #{tpu_custom_call.1} parent=27 // pred_fallthru
          _
        %s193 = sand.u32 %s44, 1
        %s194 = scalar_lea.sflag [#allocation3], %s193
        %s195 = sand.u32 %s44, 1
        %s196 = smul.addr %s195, 8
        %s197 = scalar_lea.vmem [#allocation2], %s196
        %p198 = pneg %p57
        %p199 = pneg %p54
        %s200 = sand.u32 %s72, 1
        %s201 = scalar_lea.sflag [#allocation6], %s200
        %s202 = sand.u32 %s72, 1
        %s203 = smul.addr %s202, 8
        %s204 = scalar_lea.vmem [#allocation5], %s203
        %p205 = pneg %p85
        %p206 = pneg %p82
        %p207 = pneg %p111
        %p208 = pneg %p108
        %s209 = sand.u32 %s98, 1
        %s210 = scalar_lea.sflag [#allocation4], %s209
        %s211 = sand.u32 %s98, 1
        %s212 = smul.addr %s211, 8
        %s213 = scalar_lea.vmem [#allocation7], %s212
        %s214 = sadd.s32 %s26, %s27
        %s215 = sadd.s32 %s26, %s27
        %p216 = scmp.eq.s32.totalorder %s27, 0
        // Predicated region
        $region37: #{tpu_custom_call.1} parent=27 // pred_check
          %p217 = pneg %p216
        $region38: #{tpu_custom_call.1} parent=27 // pred_check_branch
          %219 = sbr.rel (%p217) target = $region40
        $region39: #{tpu_custom_call.1} parent=27 // pred_region
          %220 = vst [vmem:[%s213] sm:$0xff] 0.0
        $region40: #{tpu_custom_call.1} parent=27 // pred_fallthru
          _
        %v221 = vld [vmem:[%s179] sm:$0xff]
        %v222 = vld [vmem:[%s188] sm:$0xff]
        %v223 = vlog2.pop %v221
        %v224 = vmul.f32 %v223, 0.6931472
        %v225 = vmax.f32 %v224, -100.0
        %v226 = vsub.f32 1.0, %v221
        %v227 = vlog2.pop %v226
        %v228 = vmul.f32 %v227, 0.6931472
        %v229 = vmax.f32 %v228, -100.0
        %v230 = vmul.f32 %v222, %v225
        %v231 = vsub.f32 1.0, %v222
        %v232 = vmul.f32 %v231, %v229
        %v233 = vadd.f32 %v230, %v232
        %v234 = vsub.f32 0.0, %v233
        %v235 = vsub.f32 0.0, %v234
        %v236 = vmul.f32 %v235, 1.442695
        %v237 = vpow.pop %v236
        %v238 = vsub.f32 1.0, %v237
        %v239 = vmax.f32 %v238, 0.0
        %v240 = vmul.f32 %v239, %v239
        %v241 = vmul.f32 %v240, %v234
        %v242 = vld [vmem:[%s213] sm:$0xff]
        %v243 = vadd.f32 %v241, 0.0
        %v244 = vadd.f32 %v242, %v243
        %245 = vst [vmem:[%s213] sm:$0xff] %v244
        %s246 = sand.u32 %s98, 1
        %s247 = scalar_lea.sflag [#allocation4], %s246
        %s248 = sand.u32 %s98, 1
        %s249 = smul.addr %s248, 8
        %s250 = scalar_lea.vmem [#allocation7], %s249
        // Predicated region
        $region41: #{tpu_custom_call.1} parent=27 // pred_check
          %p251 = pneg %p108
        $region42: #{tpu_custom_call.1} parent=27 // pred_check_branch
          %253 = sbr.rel (%p251) target = $region44
        $region43: #{tpu_custom_call.1} parent=27 // pred_region
          %s255 = ssub.s32 128, 128
          %256 = vsyncadd %s247, %s255
          %s257 = smul.addr %s26, 128
          %s258 = scalar_lea.hbm %s2, %s257
          %s260 = sshll.u32 %s250, 4
          %s261 = int_to_ptr.vmem [resolvable:$true] %s260
          %263 = dma.vmem_to_hbm [thread:$0]  %s261, 128, %s258, %s247
        $region44: #{tpu_custom_call.1} parent=27 // pred_fallthru
          _
      $region28: #{tpu_custom_call.1} parent=5 // pred_fallthru
        _
      %p264 = scmp.le.s32.totalorder 2, %s17
      // Predicated region
      $region45: #{tpu_custom_call.1} parent=5 // pred_check
        %p265 = pneg %p264
      $region46: #{tpu_custom_call.1} parent=5 // pred_check_branch
        %267 = sbr.rel (%p265) target = $region48
      $region47: #{tpu_custom_call.1} parent=5 // pred_region
        %s268 = ssub.s32 %s17, 2
        // Predicated region
        $region49: #{tpu_custom_call.1} parent=47 // pred_check
          %p269 = pneg %p114
        $region50: #{tpu_custom_call.1} parent=47 // pred_check_branch
          %271 = sbr.rel (%p269) target = $region52
        $region51: #{tpu_custom_call.1} parent=47 // pred_region
          %s272 = sand.u32 %s99, 1
          %s273 = scalar_lea.sflag [#allocation4], %s272
          %s274 = sand.u32 %s99, 1
          %s275 = smul.addr %s274, 8
          %s276 = scalar_lea.vmem [#allocation7], %s275
          %277 = dma.done %s273, 128
        $region52: #{tpu_custom_call.1} parent=47 // pred_fallthru
          _
      $region48: #{tpu_custom_call.1} parent=5 // pred_fallthru
        _
    $region6: #{tpu_custom_call.1} parent=1 // loop_footer
      %s21 = sadd.s32 1, %s17
    $region7: #{tpu_custom_call.1} parent=1 // loop_footer_branch
      %16 = sbr.rel target = $region3
    $region8: #{tpu_custom_call.1} parent=1 // loop_exit
      _
    %278 = vsyncpa [#allocation3], 1
    %s279 = scalar_lea.sflag [#allocation3], 1
    %280 = vsyncpa %s279, 1
    %281 = vsyncpa [#allocation6], 1
    %s282 = scalar_lea.sflag [#allocation6], 1
    %283 = vsyncpa %s282, 1
    %284 = vsyncpa [#allocation4], 1
    %s285 = scalar_lea.sflag [#allocation4], 1
    %286 = vsyncpa %s285, 1

</llo_original>
